<compile_context>
chip_gen: v7x
topology: tpu7x:2x2x1
jax: 0.10.0
libtpu: 0.0.40
codegen_flags: <defaults>
</compile_context>

<pallas_src>
import functools

import jax
import jax.numpy as jnp
from jax.experimental import pallas as pl
from jax.experimental.pallas import tpu as pltpu


def _mlp_kernel(x_ref, w1t_ref, b1_ref, w2_ref, b2_ref, o_ref):
    # x: [TB, N], w1t: [N, O], b1: [1, O], w2: [1, O], b2: [1, 1], o: [TB, 1]
    x = x_ref[...]

    # fc1: x @ W1^T + b1  (MXU matmul, f32 accumulation), tanh on the EUP.
    h = jnp.dot(x, w1t_ref[...], preferred_element_type=jnp.float32)
    h = jnp.tanh(h + b1_ref[...])

    # fc2: Linear(O -> 1) is a degenerate 1-column matmul; do it as a VPU
    # multiply + lane reduction (XLU) to avoid an MXU push/drain round trip.
    y = jnp.sum(h * w2_ref[...], axis=-1, keepdims=True) + b2_ref[...]

    o_ref[...] = y.astype(o_ref.dtype)


def _round_up(x, m):
    return (x + m - 1) // m * m


@functools.partial(jax.jit, static_argnames=("tile_b",))
def mlp_forward(x, w1, b1, w2, b2, *, tile_b=512):
    """y = tanh(x @ w1.T + b1) @ w2.T + b2, matching torch `Net.forward`.

    Args:
      x : [B, N] float32
      w1: [O, N] float32 (torch fc1.weight layout)
      b1: [O]    float32
      w2: [1, O] float32 (torch fc2.weight layout)
      b2: [1]    float32
    Returns:
      y : [B, 1] float32
    """
    B, N = x.shape
    O = w1.shape[0]

    # Parameter prep (transpose / reshape) lives inside the jit, so it is
    # fused / constant-folded rather than dispatched eagerly every call.
    w1t = w1.T                    # [N, O]
    b1_2d = b1.reshape(1, O)      # [1, O]
    w2_2d = w2.reshape(1, O)      # [1, O] row form; fc2 done as a reduction
    b2_2d = b2.reshape(1, 1)      # [1, 1]

    # Batch tiling: TILE_B rows per grid step (multiple of 8 sublanes).
    tb = min(tile_b, _round_up(B, 8))
    b_pad = _round_up(B, tb)
    if b_pad != B:
        x = jnp.pad(x, ((0, b_pad - B), (0, 0)))
    grid = (pl.cdiv(b_pad, tb),)

    y = pl.pallas_call(
        _mlp_kernel,
        out_shape=jax.ShapeDtypeStruct((b_pad, 1), x.dtype),
        grid=grid,
        in_specs=[
            pl.BlockSpec((tb, N), lambda i: (i, 0)),   # x tile (streamed)
            pl.BlockSpec((N, O), lambda i: (0, 0)),    # W1^T (resident)
            pl.BlockSpec((1, O), lambda i: (0, 0)),    # b1
            pl.BlockSpec((1, O), lambda i: (0, 0)),    # w2 row
            pl.BlockSpec((1, 1), lambda i: (0, 0)),    # b2
        ],
        out_specs=pl.BlockSpec((tb, 1), lambda i: (i, 0)),
        compiler_params=pltpu.CompilerParams(
            # Batch tiles are independent -> megacore-shard on v7x (2 TCs);
            # no effect (and harmless) on v5e / v6e (1 TC).
            dimension_semantics=("parallel",),
            # Explicit budget, safe on v5e / v6e / v7x (per-step usage here
            # is only a few hundred KiB even at TILE_B=512).
            vmem_limit_bytes=32 * 1024 * 1024,
        ),
    )(x, w1t, b1_2d, w2_2d, b2_2d)

    return y[:B]


if __name__ == "__main__":
    # Small shapes consistent with the module: batch=8, N=32, O=32.
    B, N, O = 8, 32, 32

    key = jax.random.PRNGKey(0)
    kx, k1, k2, k3, k4 = jax.random.split(key, 5)

    x = jax.random.normal(kx, (B, N), dtype=jnp.float32)

    # Deterministic parameter init (mimicking torch Linear's fan-in uniform).
    bound1 = 1.0 / jnp.sqrt(jnp.float32(N))
    w1 = jax.random.uniform(k1, (O, N), jnp.float32, -bound1, bound1)
    b1 = jax.random.uniform(k2, (O,), jnp.float32, -bound1, bound1)

    bound2 = 1.0 / jnp.sqrt(jnp.float32(O))
    w2 = jax.random.uniform(k3, (1, O), jnp.float32, -bound2, bound2)
    b2 = jax.random.uniform(k4, (1,), jnp.float32, -bound2, bound2)

    y = jax.block_until_ready(mlp_forward(x, w1, b1, w2, b2))

    # Pure-JAX reference check.
    y_ref = jnp.tanh(x @ w1.T + b1) @ w2.T + b2
    assert y.shape == (B, 1)
    assert jnp.allclose(y, y_ref, atol=1e-5, rtol=1e-5)

    print("KERNEL_OK")
</pallas_src>

<mosaic_0001>
module attributes {stable_mosaic.version = 11 : i64} {
  func.func @_mlp_kernel(%arg0: i32, %arg1: memref<8x32xf32, #tpu.memory_space<vmem>>, %arg2: memref<32x32xf32, #tpu.memory_space<vmem>>, %arg3: memref<1x32xf32, #tpu.memory_space<vmem>>, %arg4: memref<1x32xf32, #tpu.memory_space<vmem>>, %arg5: memref<1x1xf32, #tpu.memory_space<vmem>>, %arg6: memref<8x1xf32, #tpu.memory_space<vmem>>) attributes {dimension_semantics = [#tpu.dimension_semantics<parallel>], iteration_bounds = array<i64: 1>, scalar_prefetch = 0 : i64, scratch_operands = 0 : i64, tpu.core_type = #tpu.core_type<tc>, window_params = [{transform_indices = @transform_0, window_bounds = array<i64: 8, 32>}, {pipeline_mode = #tpu.pipeline_mode<synchronous>, transform_indices = @transform_1, window_bounds = array<i64: 32, 32>}, {pipeline_mode = #tpu.pipeline_mode<synchronous>, transform_indices = @transform_2, window_bounds = array<i64: 1, 32>}, {pipeline_mode = #tpu.pipeline_mode<synchronous>, transform_indices = @transform_3, window_bounds = array<i64: 1, 32>}, {pipeline_mode = #tpu.pipeline_mode<synchronous>, transform_indices = @transform_4, window_bounds = array<i64: 1, 1>}, {transform_indices = @transform_5, window_bounds = array<i64: 8, 1>}]} {
    %c0 = arith.constant 0 : index
    %c0_0 = arith.constant 0 : index
    %0 = vector.load %arg1[%c0, %c0_0] : memref<8x32xf32, #tpu.memory_space<vmem>>, vector<8x32xf32>
    %c0_1 = arith.constant 0 : index
    %c0_2 = arith.constant 0 : index
    %1 = vector.load %arg2[%c0_1, %c0_2] : memref<32x32xf32, #tpu.memory_space<vmem>>, vector<32x32xf32>
    %cst = arith.constant dense<0.000000e+00> : vector<8x32xf32>
    %2 = tpu.matmul %0, %1, %cst {dimension_numbers = #tpu.dot_dimension_numbers<[1], [0], [0], [1], [0, 0, 1, 1], [], []>} : vector<8x32xf32>, vector<32x32xf32>, vector<8x32xf32> -> vector<8x32xf32>
    %c0_3 = arith.constant 0 : index
    %c0_4 = arith.constant 0 : index
    %3 = vector.load %arg3[%c0_3, %c0_4] : memref<1x32xf32, #tpu.memory_space<vmem>>, vector<1x32xf32>
    %4 = vector.broadcast %3 : vector<1x32xf32> to vector<8x32xf32>
    %5 = arith.addf %2, %4 : vector<8x32xf32>
    %6 = math.tanh %5 : vector<8x32xf32>
    %c0_5 = arith.constant 0 : index
    %c0_6 = arith.constant 0 : index
    %7 = vector.load %arg4[%c0_5, %c0_6] : memref<1x32xf32, #tpu.memory_space<vmem>>, vector<1x32xf32>
    %8 = vector.broadcast %7 : vector<1x32xf32> to vector<8x32xf32>
    %9 = arith.mulf %6, %8 : vector<8x32xf32>
    %cst_7 = arith.constant dense<0.000000e+00> : vector<8xf32>
    %10 = vector.multi_reduction <add>, %9, %cst_7 [1] : vector<8x32xf32> to vector<8xf32>
    %11 = vector.shape_cast %10 : vector<8xf32> to vector<8x1xf32>
    %c0_8 = arith.constant 0 : index
    %c0_9 = arith.constant 0 : index
    %12 = vector.load %arg5[%c0_8, %c0_9] : memref<1x1xf32, #tpu.memory_space<vmem>>, vector<1x1xf32>
    %13 = vector.broadcast %12 : vector<1x1xf32> to vector<8x1xf32>
    %14 = arith.addf %11, %13 : vector<8x1xf32>
    %c0_10 = arith.constant 0 : index
    %c0_11 = arith.constant 0 : index
    %15 = vector.load %arg6[%c0_10, %c0_11] : memref<8x1xf32, #tpu.memory_space<vmem>>, vector<8x1xf32>
    tpu.vector_store %arg6[%c0_10, %c0_11], %14 {strides = array<i32>} : memref<8x1xf32, #tpu.memory_space<vmem>>, vector<8x1xf32>,
    return
  }
  func.func @transform_0(%arg0: i32) -> (i32, i32) {
    %c0_i32 = arith.constant 0 : i32
    %c0_i32_0 = arith.constant 0 : i32
    return %arg0, %c0_i32 : i32, i32
  }
  func.func @transform_1(%arg0: i32) -> (i32, i32) {
    %c0_i32 = arith.constant 0 : i32
    %c0_i32_0 = arith.constant 0 : i32
    %c0_i32_1 = arith.constant 0 : i32
    return %c0_i32, %c0_i32_0 : i32, i32
  }
  func.func @transform_2(%arg0: i32) -> (i32, i32) {
    %c0_i32 = arith.constant 0 : i32
    %c0_i32_0 = arith.constant 0 : i32
    %c0_i32_1 = arith.constant 0 : i32
    return %c0_i32, %c0_i32_0 : i32, i32
  }
  func.func @transform_3(%arg0: i32) -> (i32, i32) {
    %c0_i32 = arith.constant 0 : i32
    %c0_i32_0 = arith.constant 0 : i32
    %c0_i32_1 = arith.constant 0 : i32
    return %c0_i32, %c0_i32_0 : i32, i32
  }
  func.func @transform_4(%arg0: i32) -> (i32, i32) {
    %c0_i32 = arith.constant 0 : i32
    %c0_i32_0 = arith.constant 0 : i32
    %c0_i32_1 = arith.constant 0 : i32
    return %c0_i32, %c0_i32_0 : i32, i32
  }
  func.func @transform_5(%arg0: i32) -> (i32, i32) {
    %c0_i32 = arith.constant 0 : i32
    %c0_i32_0 = arith.constant 0 : i32
    return %arg0, %c0_i32 : i32, i32
  }
}

</mosaic_0001>

<llo_original>
// kernel: mlp_forward.1
$region0: #{mlp_forward.1}
  #allocation0 [shape = 'u32[]', space=smem, size = 0x4, offset = 0x4, fixed_abs, tag = 'smem constant byte address 0x4 - core index']
  #allocation1 [shape = 'u32[144,128]{1,0:T(1,128)}', space=vmem, size = 0x12000, scoped, tag = 'internal scratch']
  #allocation2 [shape = 'f32[1,1]{1,0:T(1,128)S(1)}', space=vmem, size = 0x200, scoped, tag = 'scoped memory for mlp_forward.1']
  %s0 = inlined_call_operand.vmem [shape: f32[8,32], index: 0, kind: input, shape index: {}]
  %s1 = inlined_call_operand.vmem [shape: f32[32,32], index: 1, kind: input, shape index: {}]
  %s2 = inlined_call_operand.vmem [shape: f32[1,32], index: 2, kind: input, shape index: {}]
  %s3 = inlined_call_operand.vmem [shape: f32[1,32], index: 3, kind: input, shape index: {}]
  %s4 = inlined_call_operand.<no memory space> [shape: f32[1,1], index: 4, kind: input, shape index: {}]
  %s5 = inlined_call_operand.vmem [shape: f32[8,1], index: 5, kind: output, shape index: {}]
  %s6 = sld [smem:[#allocation0]]
  $region30: #{mlp_forward.1} parent=0
    _
  %s8 = ssub.s32 1, %s6
  %s9 = scalar_select 0, %s8, %s6
  %v10 = vstv %s4
  %11 = vst [vmem:[#allocation2] sm:$0x1] %v10
  // Predicated region
  $region2: #{mlp_forward.1} parent=0 // pred_check
    _
  $region3: #{mlp_forward.1} parent=0 // pred_check_branch
    %13 = sbr.rel (0) target = $region5
  $region4: #{mlp_forward.1} parent=0 // pred_region
    _
  $region5: #{mlp_forward.1} parent=0 // pred_fallthru
    _
  // Predicated region
  $region6: #{mlp_forward.1} parent=0 // pred_check
    _
  $region7: #{mlp_forward.1} parent=0 // pred_check_branch
    %15 = sbr.rel (0) target = $region9
  $region8: #{mlp_forward.1} parent=0 // pred_region
    _
  $region9: #{mlp_forward.1} parent=0 // pred_fallthru
    _
  // Predicated region
  $region10: #{mlp_forward.1} parent=0 // pred_check
    _
  $region11: #{mlp_forward.1} parent=0 // pred_check_branch
    %17 = sbr.rel (0) target = $region13
  $region12: #{mlp_forward.1} parent=0 // pred_region
    _
  $region13: #{mlp_forward.1} parent=0 // pred_fallthru
    _
  // Predicated region
  $region14: #{mlp_forward.1} parent=0 // pred_check
    _
  $region15: #{mlp_forward.1} parent=0 // pred_check_branch
    %19 = sbr.rel (0) target = $region17
  $region16: #{mlp_forward.1} parent=0 // pred_region
    _
  $region17: #{mlp_forward.1} parent=0 // pred_fallthru
    _
  // Predicated region
  $region18: #{mlp_forward.1} parent=0 // pred_check
    _
  $region19: #{mlp_forward.1} parent=0 // pred_check_branch
    %21 = sbr.rel (0) target = $region21
  $region20: #{mlp_forward.1} parent=0 // pred_region
    _
  $region21: #{mlp_forward.1} parent=0 // pred_fallthru
    _
  %v22 = vld [vmem:[%s0] sm:$0xff]
  %v23 = vld [vmem:[%s1] sm:$0xff]
  %v24 = vld [vmem:[%s1 + $0x8] sm:$0xff]
  %v25 = vld [vmem:[%s1 + $0x10] sm:$0xff]
  %v26 = vld [vmem:[%s1 + $0x18] sm:$0xff]
  %v27 = vld [vmem:[%s2] sm:$0x1]
  %v29 = vlaneseq
  %v30 = vshrl.u32 %v29, 7
  %v31 = vsub.s32 0, %v30
  %v32 = vrot.slane %v27, %v31
  %vm34 = vcmask 261120
  %v36 = vsel %vm34, %v22, 0
  %38 = vmatprep.subr.mxu0 0.0
  %39 = vmatpush1.msra.mxu0 %v23
  %40 = vmatprep.subr.mxu0 0.0
  %41 = vmatpush1.msra.mxu0 %v24
  %42 = vmatprep.subr.mxu0 0.0
  %43 = vmatpush1.msra.mxu0 %v25
  %44 = vmatprep.subr.mxu0 0.0
  %45 = vmatpush1.msra.mxu0 %v26
  %46 = vmatprep.subr.mxu0 0.0
  %47 = vmatpush1.msra.mxu0 0.0
  %48 = vmatprep.subr.mxu0 0.0
  %49 = vmatpush1.msra.mxu0 0.0
  %50 = vmatprep.subr.mxu0 0.0
  %51 = vmatpush1.msra.mxu0 0.0
  %52 = vmatprep.subr.mxu0 0.0
  %53 = vmatpush1.msra.mxu0 0.0
  %54 = vmatprep.subr.mxu0 0.0
  %55 = vmatpush1.msra.mxu0 0.0
  %56 = vmatprep.subr.mxu0 0.0
  %57 = vmatpush1.msra.mxu0 0.0
  %58 = vmatprep.subr.mxu0 0.0
  %59 = vmatpush1.msra.mxu0 0.0
  %60 = vmatprep.subr.mxu0 0.0
  %61 = vmatpush1.msra.mxu0 0.0
  %62 = vmatprep.subr.mxu0 0.0
  %63 = vmatpush1.msra.mxu0 0.0
  %64 = vmatprep.subr.mxu0 0.0
  %65 = vmatpush1.msra.mxu0 0.0
  %66 = vmatprep.subr.mxu0 0.0
  %67 = vmatpush1.msra.mxu0 0.0
  %68 = vmatprep.subr.mxu0 0.0
  %69 = vmatpush1.msra.mxu0 0.0
  %70 = vmatprep.subr.mxu0 0.0
  %71 = vmatpush1.msra.mxu0 0.0
  %72 = vmatprep.subr.mxu0 0.0
  %73 = vmatpush1.msra.mxu0 0.0
  %74 = vmatprep.subr.mxu0 0.0
  %75 = vmatpush1.msra.mxu0 0.0
  %76 = vmatprep.subr.mxu0 0.0
  %77 = vmatpush1.msra.mxu0 0.0
  %78 = vmatprep.subr.mxu0 0.0
  %79 = vmatpush1.msra.mxu0 0.0
  %80 = vmatprep.subr.mxu0 0.0
  %81 = vmatpush1.msra.mxu0 0.0
  %82 = vmatprep.subr.mxu0 0.0
  %83 = vmatpush1.msra.mxu0 0.0
  %84 = vmatprep.subr.mxu0 0.0
  %85 = vmatpush1.msra.mxu0 0.0
  %86 = vmatprep.subr.mxu0 0.0
  %87 = vmatpush1.msra.mxu0 0.0
  %88 = vmatprep.subr.mxu0 0.0
  %89 = vmatpush1.msra.mxu0 0.0
  %90 = vmatprep.subr.mxu0 0.0
  %91 = vmatpush1.msra.mxu0 0.0
  %92 = vmatprep.subr.mxu0 0.0
  %93 = vmatpush1.msra.mxu0 0.0
  %94 = vmatprep.subr.mxu0 0.0
  %95 = vmatpush1.msra.mxu0 0.0
  %96 = vmatprep.subr.mxu0 0.0
  %97 = vmatpush1.msra.mxu0 0.0
  %98 = vmatprep.subr.mxu0 0.0
  %99 = vmatpush1.msra.mxu0 0.0
  %100 = vmatprep.subr.mxu0 0.0
  %101 = vmatpush1.msra.mxu0 0.0
  %102 = vmatprep.mubr.f32.mxu0 0.0
  %103 = vmatmul.mubr.f32.gmra.mrb[0].mxu0 %v36
  %v104 = vpop.f32.mrb[0].mxu0
  %v105 = vadd.f32 %v32, %v104
  %v106 = vpop.f32.mrb[0].mxu0
  %107 = vdwg.mxu0
  %v108 = vtanh.pop %v105
  %v109 = vld [vmem:[%s3] sm:$0x1]
  %v111 = vlaneseq
  %v112 = vshrl.u32 %v111, 7
  %v113 = vsub.s32 0, %v112
  %v114 = vrot.slane %v109, %v113
  %v116 = vmul.f32 %v108, %v114
  %v117 = vsel %vm34, %v116, 0.0
  %118 = vadd.xlane.f32.xlu0 %v117
  %v119 = vpop.xlane.xlu0 %118
  %v120 = vld [vmem:[#allocation2] sm:$0x1]
  %v122 = vlaneseq
  %v123 = vshrl.u32 %v122, 7
  %v124 = vsub.s32 0, %v123
  %v125 = vrot.slane %v120, %v124
  %v127 = vadd.f32 %v119, %v125
  %vm128 = vcmask 7168
  %129 = vst.msk [vmem:[%s5] sm:$0xff] %vm128, %v127
  // Predicated region
  $region22: #{mlp_forward.1} parent=0 // pred_check
    _
  $region23: #{mlp_forward.1} parent=0 // pred_check_branch
    %131 = sbr.rel (0) target = $region25
  $region24: #{mlp_forward.1} parent=0 // pred_region
    _
  $region25: #{mlp_forward.1} parent=0 // pred_fallthru
    _
  // Predicated region
  $region26: #{mlp_forward.1} parent=0 // pred_check
    _
  $region27: #{mlp_forward.1} parent=0 // pred_check_branch
    %133 = sbr.rel (0) target = $region29
  $region28: #{mlp_forward.1} parent=0 // pred_region
    _
  $region29: #{mlp_forward.1} parent=0 // pred_fallthru
    _

</llo_original>
